<compile_context>
chip_gen: v7x
topology: tpu7x:2x2x1
jax: 0.10.0
libtpu: 0.0.40
codegen_flags: <defaults>
</compile_context>

<pallas_src>
import functools

import jax
import jax.numpy as jnp
from jax import lax
from jax.experimental import pallas as pl
from jax.experimental.pallas import tpu as pltpu

_EPS = 1e-12  # torch.nn.functional.normalize default eps


def _round_up(x, m):
    return ((x + m - 1) // m) * m


def _cosine_sim_kernel(x_ref, w_ref, o_ref, acc_ref, ssq_x_ref, ssq_w_ref):
    k = pl.program_id(2)

    @pl.when(k == 0)
    def _():
        acc_ref[...] = jnp.zeros_like(acc_ref)
        ssq_x_ref[...] = jnp.zeros_like(ssq_x_ref)
        ssq_w_ref[...] = jnp.zeros_like(ssq_w_ref)

    x = x_ref[...].astype(jnp.float32)          # (tm, tk)
    w = w_ref[...].astype(jnp.float32)          # (tn, tk)

    # Accumulate per-row sum of squares (for the deferred normalization).
    ssq_x_ref[...] += jnp.sum(x * x, axis=-1, keepdims=True)   # (tm, 1)
    ssq_w_ref[...] += jnp.sum(w * w, axis=-1, keepdims=True)   # (tn, 1)

    # Raw x @ w.T without materializing a transpose: contract last axes.
    acc_ref[...] += lax.dot_general(
        x, w,
        dimension_numbers=(((1,), (1,)), ((), ())),
        preferred_element_type=jnp.float32)

    @pl.when(k == pl.num_programs(2) - 1)
    def _():
        # v / max(||v||, eps)  ==  v * rsqrt(max(sum_sq, eps^2))
        inv_x = lax.rsqrt(jnp.maximum(ssq_x_ref[...], _EPS * _EPS))  # (tm, 1)
        inv_w = lax.rsqrt(jnp.maximum(ssq_w_ref[...], _EPS * _EPS))  # (tn, 1)
        o_ref[...] = (acc_ref[...] * inv_x * inv_w.T).astype(o_ref.dtype)


@functools.partial(jax.jit, static_argnames=("tm", "tn", "tk"))
def cosine_similarity_classifier(x, weights, *, tm=256, tn=256, tk=512):
    """x: (B, input_dim) f32, weights: (num_classes, input_dim) f32."""
    B, D = x.shape
    C, D2 = weights.shape
    assert D == D2, "input_dim mismatch"

    # Clamp tile sizes for small problems while keeping (8,128) alignment.
    tm = min(tm, _round_up(B, 8))
    tn = min(tn, _round_up(C, 128))
    tk = min(tk, _round_up(D, 128))

    Bp = _round_up(B, tm)
    Cp = _round_up(C, tn)
    Dp = _round_up(D, tk)

    x_p = x if (Bp == B and Dp == D) else jnp.pad(x, ((0, Bp - B), (0, Dp - D)))
    w_p = weights if (Cp == C and Dp == D) else jnp.pad(
        weights, ((0, Cp - C), (0, Dp - D)))

    grid = (Bp // tm, Cp // tn, Dp // tk)

    out = pl.pallas_call(
        _cosine_sim_kernel,
        out_shape=jax.ShapeDtypeStruct((Bp, Cp), x.dtype),
        grid_spec=pltpu.PrefetchScalarGridSpec(
            num_scalar_prefetch=0,
            grid=grid,
            in_specs=[
                pl.BlockSpec((tm, tk), lambda i, j, k: (i, k)),
                pl.BlockSpec((tn, tk), lambda i, j, k: (j, k)),
            ],
            out_specs=pl.BlockSpec((tm, tn), lambda i, j, k: (i, j)),
            scratch_shapes=[
                pltpu.VMEM((tm, tn), jnp.float32),   # matmul accumulator
                pltpu.VMEM((tm, 1), jnp.float32),    # sum-of-squares of x rows
                pltpu.VMEM((tn, 1), jnp.float32),    # sum-of-squares of w rows
            ],
        ),
        compiler_params=pltpu.CompilerParams(
            dimension_semantics=("parallel", "parallel", "arbitrary")),
    )(x_p, w_p)

    if Bp != B or Cp != C:
        out = out[:B, :C]
    return out


def _reference(x, weights):
    xn = x / jnp.maximum(jnp.linalg.norm(x, axis=1, keepdims=True), _EPS)
    wn = weights / jnp.maximum(
        jnp.linalg.norm(weights, axis=1, keepdims=True), _EPS)
    return xn @ wn.T


if __name__ == "__main__":
    key = jax.random.PRNGKey(0)
    k_x, k_w = jax.random.split(key)

    batch = 8
    input_dim = 32
    num_classes = 16

    # Deterministic synthetic inputs (weights ~ nn.Parameter(torch.randn(C, D)))
    x = jax.random.normal(k_x, (batch, input_dim), dtype=jnp.float32)
    weights = jax.random.normal(k_w, (num_classes, input_dim),
                                dtype=jnp.float32)

    out = cosine_similarity_classifier(x, weights)
    out = jax.block_until_ready(out)

    ref = _reference(x, weights)
    assert out.shape == (batch, num_classes)
    assert jnp.allclose(out, ref, atol=1e-5, rtol=1e-5), "mismatch vs reference"

    print("KERNEL_OK")
</pallas_src>

<mosaic_0001>
module attributes {stable_mosaic.version = 11 : i64} {
  func.func @_cosine_sim_kernel(%arg0: i32, %arg1: i32, %arg2: i32, %arg3: memref<8x128xf32, #tpu.memory_space<vmem>>, %arg4: memref<128x128xf32, #tpu.memory_space<vmem>>, %arg5: memref<8x128xf32, #tpu.memory_space<vmem>>, %arg6: memref<8x128xf32, #tpu.memory_space<vmem>>, %arg7: memref<8x1xf32, #tpu.memory_space<vmem>>, %arg8: memref<128x1xf32, #tpu.memory_space<vmem>>) attributes {dimension_semantics = [#tpu.dimension_semantics<parallel>, #tpu.dimension_semantics<parallel>, #tpu.dimension_semantics<arbitrary>], iteration_bounds = array<i64: 1, 1, 1>, scalar_prefetch = 0 : i64, scratch_operands = 3 : i64, tpu.core_type = #tpu.core_type<tc>, window_params = [{transform_indices = @transform_0, window_bounds = array<i64: 8, 128>}, {transform_indices = @transform_1, window_bounds = array<i64: 128, 128>}, {transform_indices = @transform_2, window_bounds = array<i64: 8, 128>}]} {
    %c0_i32 = arith.constant 0 : i32
    %0 = arith.cmpi eq, %arg2, %c0_i32 : i32
    %1 = arith.extui %0 : i1 to i32
    %c0_i32_0 = arith.constant 0 : i32
    %2 = arith.cmpi ne, %1, %c0_i32_0 : i32
    scf.if %2 {
      %cst_20 = arith.constant 0.000000e+00 : f32
      %24 = vector.broadcast %cst_20 : f32 to vector<8x128xf32>
      %c0_21 = arith.constant 0 : index
      %c0_22 = arith.constant 0 : index
      %25 = vector.load %arg6[%c0_21, %c0_22] : memref<8x128xf32, #tpu.memory_space<vmem>>, vector<8x128xf32>
      tpu.vector_store %arg6[%c0_21, %c0_22], %24 {strides = array<i32>} : memref<8x128xf32, #tpu.memory_space<vmem>>, vector<8x128xf32>,
      %cst_23 = arith.constant 0.000000e+00 : f32
      %26 = vector.broadcast %cst_23 : f32 to vector<8x1xf32>
      %c0_24 = arith.constant 0 : index
      %c0_25 = arith.constant 0 : index
      %27 = vector.load %arg7[%c0_24, %c0_25] : memref<8x1xf32, #tpu.memory_space<vmem>>, vector<8x1xf32>
      tpu.vector_store %arg7[%c0_24, %c0_25], %26 {strides = array<i32>} : memref<8x1xf32, #tpu.memory_space<vmem>>, vector<8x1xf32>,
      %cst_26 = arith.constant 0.000000e+00 : f32
      %28 = vector.broadcast %cst_26 : f32 to vector<128x1xf32>
      %c0_27 = arith.constant 0 : index
      %c0_28 = arith.constant 0 : index
      %29 = vector.load %arg8[%c0_27, %c0_28] : memref<128x1xf32, #tpu.memory_space<vmem>>, vector<128x1xf32>
      tpu.vector_store %arg8[%c0_27, %c0_28], %28 {strides = array<i32>} : memref<128x1xf32, #tpu.memory_space<vmem>>, vector<128x1xf32>,
    } else {
    }
    %c0 = arith.constant 0 : index
    %c0_1 = arith.constant 0 : index
    %3 = vector.load %arg3[%c0, %c0_1] : memref<8x128xf32, #tpu.memory_space<vmem>>, vector<8x128xf32>
    %c0_2 = arith.constant 0 : index
    %c0_3 = arith.constant 0 : index
    %4 = vector.load %arg4[%c0_2, %c0_3] : memref<128x128xf32, #tpu.memory_space<vmem>>, vector<128x128xf32>
    %c0_4 = arith.constant 0 : index
    %c0_5 = arith.constant 0 : index
    %5 = vector.load %arg7[%c0_4, %c0_5] : memref<8x1xf32, #tpu.memory_space<vmem>>, vector<8x1xf32>
    %6 = arith.mulf %3, %3 : vector<8x128xf32>
    %cst = arith.constant dense<0.000000e+00> : vector<8xf32>
    %7 = vector.multi_reduction <add>, %6, %cst [1] : vector<8x128xf32> to vector<8xf32>
    %8 = vector.shape_cast %7 : vector<8xf32> to vector<8x1xf32>
    %9 = arith.addf %5, %8 : vector<8x1xf32>
    %c0_6 = arith.constant 0 : index
    %c0_7 = arith.constant 0 : index
    %10 = vector.load %arg7[%c0_6, %c0_7] : memref<8x1xf32, #tpu.memory_space<vmem>>, vector<8x1xf32>
    tpu.vector_store %arg7[%c0_6, %c0_7], %9 {strides = array<i32>} : memref<8x1xf32, #tpu.memory_space<vmem>>, vector<8x1xf32>,
    %c0_8 = arith.constant 0 : index
    %c0_9 = arith.constant 0 : index
    %11 = vector.load %arg8[%c0_8, %c0_9] : memref<128x1xf32, #tpu.memory_space<vmem>>, vector<128x1xf32>
    %12 = arith.mulf %4, %4 : vector<128x128xf32>
    %cst_10 = arith.constant dense<0.000000e+00> : vector<128xf32>
    %13 = vector.multi_reduction <add>, %12, %cst_10 [1] : vector<128x128xf32> to vector<128xf32>
    %14 = vector.shape_cast %13 : vector<128xf32> to vector<128x1xf32>
    %15 = arith.addf %11, %14 : vector<128x1xf32>
    %c0_11 = arith.constant 0 : index
    %c0_12 = arith.constant 0 : index
    %16 = vector.load %arg8[%c0_11, %c0_12] : memref<128x1xf32, #tpu.memory_space<vmem>>, vector<128x1xf32>
    tpu.vector_store %arg8[%c0_11, %c0_12], %15 {strides = array<i32>} : memref<128x1xf32, #tpu.memory_space<vmem>>, vector<128x1xf32>,
    %c0_13 = arith.constant 0 : index
    %c0_14 = arith.constant 0 : index
    %17 = vector.load %arg6[%c0_13, %c0_14] : memref<8x128xf32, #tpu.memory_space<vmem>>, vector<8x128xf32>
    %cst_15 = arith.constant dense<0.000000e+00> : vector<8x128xf32>
    %18 = tpu.matmul %3, %4, %cst_15 {dimension_numbers = #tpu.dot_dimension_numbers<[1], [1], [0], [0], [0, 0, 1, 0], [], []>} : vector<8x128xf32>, vector<128x128xf32>, vector<8x128xf32> -> vector<8x128xf32>
    %19 = arith.addf %17, %18 : vector<8x128xf32>
    %c0_16 = arith.constant 0 : index
    %c0_17 = arith.constant 0 : index
    %20 = vector.load %arg6[%c0_16, %c0_17] : memref<8x128xf32, #tpu.memory_space<vmem>>, vector<8x128xf32>
    tpu.vector_store %arg6[%c0_16, %c0_17], %19 {strides = array<i32>} : memref<8x128xf32, #tpu.memory_space<vmem>>, vector<8x128xf32>,
    %c0_i32_18 = arith.constant 0 : i32
    %21 = arith.cmpi eq, %arg2, %c0_i32_18 : i32
    %22 = arith.extui %21 : i1 to i32
    %c0_i32_19 = arith.constant 0 : i32
    %23 = arith.cmpi ne, %22, %c0_i32_19 : i32
    scf.if %23 {
      %c0_20 = arith.constant 0 : index
      %c0_21 = arith.constant 0 : index
      %24 = vector.load %arg7[%c0_20, %c0_21] : memref<8x1xf32, #tpu.memory_space<vmem>>, vector<8x1xf32>
      %cst_22 = arith.constant 1.000000e-24 : f32
      %25 = vector.broadcast %cst_22 : f32 to vector<8x1xf32>
      %26 = arith.maximumf %24, %25 : vector<8x1xf32>
      %27 = math.rsqrt %26 : vector<8x1xf32>
      %c0_23 = arith.constant 0 : index
      %c0_24 = arith.constant 0 : index
      %28 = vector.load %arg8[%c0_23, %c0_24] : memref<128x1xf32, #tpu.memory_space<vmem>>, vector<128x1xf32>
      %cst_25 = arith.constant 1.000000e-24 : f32
      %29 = vector.broadcast %cst_25 : f32 to vector<128x1xf32>
      %30 = arith.maximumf %28, %29 : vector<128x1xf32>
      %31 = math.rsqrt %30 : vector<128x1xf32>
      %c0_26 = arith.constant 0 : index
      %c0_27 = arith.constant 0 : index
      %32 = vector.load %arg6[%c0_26, %c0_27] : memref<8x128xf32, #tpu.memory_space<vmem>>, vector<8x128xf32>
      %33 = vector.broadcast %27 : vector<8x1xf32> to vector<8x128xf32>
      %34 = arith.mulf %32, %33 : vector<8x128xf32>
      %35 = tpu.transpose %31, [1, 0] : vector<128x1xf32> -> vector<1x128xf32>
      %36 = vector.broadcast %35 : vector<1x128xf32> to vector<8x128xf32>
      %37 = arith.mulf %34, %36 : vector<8x128xf32>
      %c0_28 = arith.constant 0 : index
      %c0_29 = arith.constant 0 : index
      %38 = vector.load %arg5[%c0_28, %c0_29] : memref<8x128xf32, #tpu.memory_space<vmem>>, vector<8x128xf32>
      tpu.vector_store %arg5[%c0_28, %c0_29], %37 {strides = array<i32>} : memref<8x128xf32, #tpu.memory_space<vmem>>, vector<8x128xf32>,
    } else {
    }
    return
  }
  func.func @transform_0(%arg0: i32, %arg1: i32, %arg2: i32) -> (i32, i32) {
    %c0_i32 = arith.constant 0 : i32
    return %arg0, %arg2 : i32, i32
  }
  func.func @transform_1(%arg0: i32, %arg1: i32, %arg2: i32) -> (i32, i32) {
    %c0_i32 = arith.constant 0 : i32
    return %arg1, %arg2 : i32, i32
  }
  func.func @transform_2(%arg0: i32, %arg1: i32, %arg2: i32) -> (i32, i32) {
    %c0_i32 = arith.constant 0 : i32
    return %arg0, %arg1 : i32, i32
  }
}

</mosaic_0001>

<llo_original>
// kernel: cosine_similarity_classifier.1
$region0: #{cosine_similarity_classifier.1}
  #allocation0 [shape = 'u32[]', space=smem, size = 0x4, offset = 0x4, fixed_abs, tag = 'smem constant byte address 0x4 - core index']
  #allocation1 [shape = 'u32[144,128]{1,0:T(1,128)}', space=vmem, size = 0x12000, scoped, tag = 'internal scratch']
  #allocation2 [shape = 'f32[8,128]{1,0:T(8,128)}', space=vmem, size = 0x1000, scoped, tag = 'scratch operand']
  #allocation3 [shape = 'f32[8,1]{1,0:T(8,128)}', space=vmem, size = 0x1000, scoped, tag = 'scratch operand']
  #allocation4 [shape = 'f32[128,1]{1,0:T(8,128)}', space=vmem, size = 0x10000, scoped, tag = 'scratch operand']
  %s0 = inlined_call_operand.vmem [shape: f32[8,128], index: 0, kind: input, shape index: {}]
  %s1 = inlined_call_operand.vmem [shape: f32[128,128], index: 1, kind: input, shape index: {}]
  %s2 = inlined_call_operand.hbm [shape: f32[8,128], index: 2, kind: output, shape index: {}]
  %s3 = sld [smem:[#allocation0]]
  $region26: #{cosine_similarity_classifier.1} parent=0
    _
  %s5 = ssub.s32 1, %s3
  %s6 = scalar_select 0, %s5, %s3
  $region1: #{cosine_similarity_classifier.1} parent=0
    #allocation5 [shape = 'u8[4096]{0}', space=vmem, size = 0x1000, scoped, tag = 'output window, operand 0, single buffered']
    #allocation6 [shape = 's32[1]{0}', space=sflag, size = 0x4, scoped, tag = 'scoped memory for cosine_similarity_classifier.1']
    %7 = vsyncpa [#allocation6], 0
    // Predicated region
    $region2: #{cosine_similarity_classifier.1} parent=1 // pred_check
      _
    $region3: #{cosine_similarity_classifier.1} parent=1 // pred_check_branch
      %9 = sbr.rel (0) target = $region5
    $region4: #{cosine_similarity_classifier.1} parent=1 // pred_region
      _
    $region5: #{cosine_similarity_classifier.1} parent=1 // pred_fallthru
      _
    // Predicated region
    $region6: #{cosine_similarity_classifier.1} parent=1 // pred_check
      _
    $region7: #{cosine_similarity_classifier.1} parent=1 // pred_check_branch
      %11 = sbr.rel (0) target = $region9
    $region8: #{cosine_similarity_classifier.1} parent=1 // pred_region
      _
    $region9: #{cosine_similarity_classifier.1} parent=1 // pred_fallthru
      _
    %p12 = scmp.eq.s32.totalorder 0, 0
    // Predicated region
    $region10: #{cosine_similarity_classifier.1} parent=1 // pred_check
      %p13 = pneg %p12
    $region11: #{cosine_similarity_classifier.1} parent=1 // pred_check_branch
      %15 = sbr.rel (%p13) target = $region13
    $region12: #{cosine_similarity_classifier.1} parent=1 // pred_region
      %16 = vst [vmem:[#allocation2] sm:$0xff] 0.0
      %vm17 = vcmask 7168
      %18 = vst.msk [vmem:[#allocation3] sm:$0xff] %vm17, 0.0
      %19 = vst.msk [vmem:[#allocation4] sm:$0xff] %vm17, 0.0
      %20 = vst.msk [vmem:[#allocation4 + $0x8] sm:$0xff] %vm17, 0.0
      %21 = vst.msk [vmem:[#allocation4 + $0x10] sm:$0xff] %vm17, 0.0
      %22 = vst.msk [vmem:[#allocation4 + $0x18] sm:$0xff] %vm17, 0.0
      %23 = vst.msk [vmem:[#allocation4 + $0x20] sm:$0xff] %vm17, 0.0
      %24 = vst.msk [vmem:[#allocation4 + $0x28] sm:$0xff] %vm17, 0.0
      %25 = vst.msk [vmem:[#allocation4 + $0x30] sm:$0xff] %vm17, 0.0
      %26 = vst.msk [vmem:[#allocation4 + $0x38] sm:$0xff] %vm17, 0.0
      %27 = vst.msk [vmem:[#allocation4 + $0x40] sm:$0xff] %vm17, 0.0
      %28 = vst.msk [vmem:[#allocation4 + $0x48] sm:$0xff] %vm17, 0.0
      %29 = vst.msk [vmem:[#allocation4 + $0x50] sm:$0xff] %vm17, 0.0
      %30 = vst.msk [vmem:[#allocation4 + $0x58] sm:$0xff] %vm17, 0.0
      %31 = vst.msk [vmem:[#allocation4 + $0x60] sm:$0xff] %vm17, 0.0
      %32 = vst.msk [vmem:[#allocation4 + $0x68] sm:$0xff] %vm17, 0.0
      %33 = vst.msk [vmem:[#allocation4 + $0x70] sm:$0xff] %vm17, 0.0
      %34 = vst.msk [vmem:[#allocation4 + $0x78] sm:$0xff] %vm17, 0.0
    $region13: #{cosine_similarity_classifier.1} parent=1 // pred_fallthru
      _
    %v35 = vld [vmem:[%s0] sm:$0xff]
    %v36 = vld [vmem:[%s1] sm:$0xff]
    %v37 = vld [vmem:[%s1 + $0x8] sm:$0xff]
    %v38 = vld [vmem:[%s1 + $0x10] sm:$0xff]
    %v39 = vld [vmem:[%s1 + $0x18] sm:$0xff]
    %v40 = vld [vmem:[%s1 + $0x20] sm:$0xff]
    %v41 = vld [vmem:[%s1 + $0x28] sm:$0xff]
    %v42 = vld [vmem:[%s1 + $0x30] sm:$0xff]
    %v43 = vld [vmem:[%s1 + $0x38] sm:$0xff]
    %v44 = vld [vmem:[%s1 + $0x40] sm:$0xff]
    %v45 = vld [vmem:[%s1 + $0x48] sm:$0xff]
    %v46 = vld [vmem:[%s1 + $0x50] sm:$0xff]
    %v47 = vld [vmem:[%s1 + $0x58] sm:$0xff]
    %v48 = vld [vmem:[%s1 + $0x60] sm:$0xff]
    %v49 = vld [vmem:[%s1 + $0x68] sm:$0xff]
    %v50 = vld [vmem:[%s1 + $0x70] sm:$0xff]
    %v51 = vld [vmem:[%s1 + $0x78] sm:$0xff]
    %v52 = vld [vmem:[#allocation3] sm:$0xff]
    %v53 = vmul.f32 %v35, %v35
    %54 = vadd.xlane.f32.xlu0 %v53
    %v55 = vpop.xlane.xlu0 %54
    %v56 = vadd.f32 %v52, %v55
    %vm57 = vcmask 7168
    %58 = vst.msk [vmem:[#allocation3] sm:$0xff] %vm57, %v56
    %v59 = vld [vmem:[#allocation4] sm:$0xff]
    %v60 = vld [vmem:[#allocation4 + $0x8] sm:$0xff]
    %v61 = vld [vmem:[#allocation4 + $0x10] sm:$0xff]
    %v62 = vld [vmem:[#allocation4 + $0x18] sm:$0xff]
    %v63 = vld [vmem:[#allocation4 + $0x20] sm:$0xff]
    %v64 = vld [vmem:[#allocation4 + $0x28] sm:$0xff]
    %v65 = vld [vmem:[#allocation4 + $0x30] sm:$0xff]
    %v66 = vld [vmem:[#allocation4 + $0x38] sm:$0xff]
    %v67 = vld [vmem:[#allocation4 + $0x40] sm:$0xff]
    %v68 = vld [vmem:[#allocation4 + $0x48] sm:$0xff]
    %v69 = vld [vmem:[#allocation4 + $0x50] sm:$0xff]
    %v70 = vld [vmem:[#allocation4 + $0x58] sm:$0xff]
    %v71 = vld [vmem:[#allocation4 + $0x60] sm:$0xff]
    %v72 = vld [vmem:[#allocation4 + $0x68] sm:$0xff]
    %v73 = vld [vmem:[#allocation4 + $0x70] sm:$0xff]
    %v74 = vld [vmem:[#allocation4 + $0x78] sm:$0xff]
    %v75 = vmul.f32 %v36, %v36
    %v76 = vmul.f32 %v37, %v37
    %v77 = vmul.f32 %v38, %v38
    %v78 = vmul.f32 %v39, %v39
    %v79 = vmul.f32 %v40, %v40
    %v80 = vmul.f32 %v41, %v41
    %v81 = vmul.f32 %v42, %v42
    %v82 = vmul.f32 %v43, %v43
    %v83 = vmul.f32 %v44, %v44
    %v84 = vmul.f32 %v45, %v45
    %v85 = vmul.f32 %v46, %v46
    %v86 = vmul.f32 %v47, %v47
    %v87 = vmul.f32 %v48, %v48
    %v88 = vmul.f32 %v49, %v49
    %v89 = vmul.f32 %v50, %v50
    %v90 = vmul.f32 %v51, %v51
    %91 = vadd.xlane.f32.xlu0 %v75
    %v92 = vpop.xlane.xlu0 %91
    %93 = vadd.xlane.f32.xlu0 %v76
    %v94 = vpop.xlane.xlu0 %93
    %95 = vadd.xlane.f32.xlu0 %v77
    %v96 = vpop.xlane.xlu0 %95
    %97 = vadd.xlane.f32.xlu0 %v78
    %v98 = vpop.xlane.xlu0 %97
    %99 = vadd.xlane.f32.xlu0 %v79
    %v100 = vpop.xlane.xlu0 %99
    %101 = vadd.xlane.f32.xlu0 %v80
    %v102 = vpop.xlane.xlu0 %101
    %103 = vadd.xlane.f32.xlu0 %v81
    %v104 = vpop.xlane.xlu0 %103
    %105 = vadd.xlane.f32.xlu0 %v82
    %v106 = vpop.xlane.xlu0 %105
    %107 = vadd.xlane.f32.xlu0 %v83
    %v108 = vpop.xlane.xlu0 %107
    %109 = vadd.xlane.f32.xlu0 %v84
    %v110 = vpop.xlane.xlu0 %109
    %111 = vadd.xlane.f32.xlu0 %v85
    %v112 = vpop.xlane.xlu0 %111
    %113 = vadd.xlane.f32.xlu0 %v86
    %v114 = vpop.xlane.xlu0 %113
    %115 = vadd.xlane.f32.xlu0 %v87
    %v116 = vpop.xlane.xlu0 %115
    %117 = vadd.xlane.f32.xlu0 %v88
    %v118 = vpop.xlane.xlu0 %117
    %119 = vadd.xlane.f32.xlu0 %v89
    %v120 = vpop.xlane.xlu0 %119
    %121 = vadd.xlane.f32.xlu0 %v90
    %v122 = vpop.xlane.xlu0 %121
    %v123 = vadd.f32 %v59, %v92
    %v124 = vadd.f32 %v60, %v94
    %v125 = vadd.f32 %v61, %v96
    %v126 = vadd.f32 %v62, %v98
    %v127 = vadd.f32 %v63, %v100
    %v128 = vadd.f32 %v64, %v102
    %v129 = vadd.f32 %v65, %v104
    %v130 = vadd.f32 %v66, %v106
    %v131 = vadd.f32 %v67, %v108
    %v132 = vadd.f32 %v68, %v110
    %v133 = vadd.f32 %v69, %v112
    %v134 = vadd.f32 %v70, %v114
    %v135 = vadd.f32 %v71, %v116
    %v136 = vadd.f32 %v72, %v118
    %v137 = vadd.f32 %v73, %v120
    %v138 = vadd.f32 %v74, %v122
    %139 = vst.msk [vmem:[#allocation4] sm:$0xff] %vm57, %v123
    %140 = vst.msk [vmem:[#allocation4 + $0x8] sm:$0xff] %vm57, %v124
    %141 = vst.msk [vmem:[#allocation4 + $0x10] sm:$0xff] %vm57, %v125
    %142 = vst.msk [vmem:[#allocation4 + $0x18] sm:$0xff] %vm57, %v126
    %143 = vst.msk [vmem:[#allocation4 + $0x20] sm:$0xff] %vm57, %v127
    %144 = vst.msk [vmem:[#allocation4 + $0x28] sm:$0xff] %vm57, %v128
    %145 = vst.msk [vmem:[#allocation4 + $0x30] sm:$0xff] %vm57, %v129
    %146 = vst.msk [vmem:[#allocation4 + $0x38] sm:$0xff] %vm57, %v130
    %147 = vst.msk [vmem:[#allocation4 + $0x40] sm:$0xff] %vm57, %v131
    %148 = vst.msk [vmem:[#allocation4 + $0x48] sm:$0xff] %vm57, %v132
    %149 = vst.msk [vmem:[#allocation4 + $0x50] sm:$0xff] %vm57, %v133
    %150 = vst.msk [vmem:[#allocation4 + $0x58] sm:$0xff] %vm57, %v134
    %151 = vst.msk [vmem:[#allocation4 + $0x60] sm:$0xff] %vm57, %v135
    %152 = vst.msk [vmem:[#allocation4 + $0x68] sm:$0xff] %vm57, %v136
    %153 = vst.msk [vmem:[#allocation4 + $0x70] sm:$0xff] %vm57, %v137
    %154 = vst.msk [vmem:[#allocation4 + $0x78] sm:$0xff] %vm57, %v138
    %v155 = vld [vmem:[#allocation2] sm:$0xff]
    %156 = vmatprep.subr.mxu0 0.0
    %157 = vmatpush1.xpose.msra.mxu0 %v36
    %158 = vmatprep.subr.mxu0 0.0
    %159 = vmatpush1.xpose.msra.mxu0 %v37
    %160 = vmatprep.subr.mxu0 0.0
    %161 = vmatpush1.xpose.msra.mxu0 %v38
    %162 = vmatprep.subr.mxu0 0.0
    %163 = vmatpush1.xpose.msra.mxu0 %v39
    %164 = vmatprep.subr.mxu0 0.0
    %165 = vmatpush1.xpose.msra.mxu0 %v40
    %166 = vmatprep.subr.mxu0 0.0
    %167 = vmatpush1.xpose.msra.mxu0 %v41
    %168 = vmatprep.subr.mxu0 0.0
    %169 = vmatpush1.xpose.msra.mxu0 %v42
    %170 = vmatprep.subr.mxu0 0.0
    %171 = vmatpush1.xpose.msra.mxu0 %v43
    %172 = vmatprep.subr.mxu0 0.0
    %173 = vmatpush1.xpose.msra.mxu0 %v44
    %174 = vmatprep.subr.mxu0 0.0
    %175 = vmatpush1.xpose.msra.mxu0 %v45
    %176 = vmatprep.subr.mxu0 0.0
    %177 = vmatpush1.xpose.msra.mxu0 %v46
    %178 = vmatprep.subr.mxu0 0.0
    %179 = vmatpush1.xpose.msra.mxu0 %v47
    %180 = vmatprep.subr.mxu0 0.0
    %181 = vmatpush1.xpose.msra.mxu0 %v48
    %182 = vmatprep.subr.mxu0 0.0
    %183 = vmatpush1.xpose.msra.mxu0 %v49
    %184 = vmatprep.subr.mxu0 0.0
    %185 = vmatpush1.xpose.msra.mxu0 %v50
    %186 = vmatprep.subr.mxu0 0.0
    %187 = vmatpush1.xpose.msra.mxu0 %v51
    %188 = vmatprep.subr.mxu0 0.0
    %189 = vmatpush1.xpose.msra.mxu0 0.0
    %190 = vmatprep.subr.mxu0 0.0
    %191 = vmatpush1.xpose.msra.mxu0 0.0
    %192 = vmatprep.subr.mxu0 0.0
    %193 = vmatpush1.xpose.msra.mxu0 0.0
    %194 = vmatprep.subr.mxu0 0.0
    %195 = vmatpush1.xpose.msra.mxu0 0.0
    %196 = vmatprep.subr.mxu0 0.0
    %197 = vmatpush1.xpose.msra.mxu0 0.0
    %198 = vmatprep.subr.mxu0 0.0
    %199 = vmatpush1.xpose.msra.mxu0 0.0
    %200 = vmatprep.subr.mxu0 0.0
    %201 = vmatpush1.xpose.msra.mxu0 0.0
    %202 = vmatprep.subr.mxu0 0.0
    %203 = vmatpush1.xpose.msra.mxu0 0.0
    %204 = vmatprep.subr.mxu0 0.0
    %205 = vmatpush1.xpose.msra.mxu0 0.0
    %206 = vmatprep.subr.mxu0 0.0
    %207 = vmatpush1.xpose.msra.mxu0 0.0
    %208 = vmatprep.subr.mxu0 0.0
    %209 = vmatpush1.xpose.msra.mxu0 0.0
    %210 = vmatprep.subr.mxu0 0.0
    %211 = vmatpush1.xpose.msra.mxu0 0.0
    %212 = vmatprep.subr.mxu0 0.0
    %213 = vmatpush1.xpose.msra.mxu0 0.0
    %214 = vmatprep.subr.mxu0 0.0
    %215 = vmatpush1.xpose.msra.mxu0 0.0
    %216 = vmatprep.subr.mxu0 0.0
    %217 = vmatpush1.xpose.msra.mxu0 0.0
    %218 = vmatprep.subr.mxu0 0.0
    %219 = vmatpush1.xpose.msra.mxu0 0.0
    %220 = vmatprep.mubr.f32.mxu0 0.0
    %221 = vmatmul.mubr.f32.gmra.mrb[0].mxu0 %v35
    %v222 = vpop.f32.mrb[0].mxu0
    %v223 = vadd.f32 0.0, %v222
    %v224 = vpop.f32.mrb[0].mxu0
    %225 = vdwg.mxu0
    %v226 = vadd.f32 %v155, %v223
    %227 = vst [vmem:[#allocation2] sm:$0xff] %v226
    // Predicated region
    $region14: #{cosine_similarity_classifier.1} parent=1 // pred_check
      %p228 = pneg %p12
    $region15: #{cosine_similarity_classifier.1} parent=1 // pred_check_branch
      %230 = sbr.rel (%p228) target = $region17
    $region16: #{cosine_similarity_classifier.1} parent=1 // pred_region
      %v231 = vld [vmem:[#allocation3] sm:$0xff]
      %v232 = vmax.f32 %v231, 1e-24
      %v233 = vrsqrt.pop %v232
      %v234 = vld [vmem:[#allocation4] sm:$0xff]
      %v235 = vld [vmem:[#allocation4 + $0x8] sm:$0xff]
      %v236 = vld [vmem:[#allocation4 + $0x10] sm:$0xff]
      %v237 = vld [vmem:[#allocation4 + $0x18] sm:$0xff]
      %v238 = vld [vmem:[#allocation4 + $0x20] sm:$0xff]
      %v239 = vld [vmem:[#allocation4 + $0x28] sm:$0xff]
      %v240 = vld [vmem:[#allocation4 + $0x30] sm:$0xff]
      %v241 = vld [vmem:[#allocation4 + $0x38] sm:$0xff]
      %v242 = vld [vmem:[#allocation4 + $0x40] sm:$0xff]
      %v243 = vld [vmem:[#allocation4 + $0x48] sm:$0xff]
      %v244 = vld [vmem:[#allocation4 + $0x50] sm:$0xff]
      %v245 = vld [vmem:[#allocation4 + $0x58] sm:$0xff]
      %v246 = vld [vmem:[#allocation4 + $0x60] sm:$0xff]
      %v247 = vld [vmem:[#allocation4 + $0x68] sm:$0xff]
      %v248 = vld [vmem:[#allocation4 + $0x70] sm:$0xff]
      %v249 = vld [vmem:[#allocation4 + $0x78] sm:$0xff]
      %v250 = vmax.f32 %v234, 1e-24
      %v251 = vmax.f32 %v235, 1e-24
      %v252 = vmax.f32 %v236, 1e-24
      %v253 = vmax.f32 %v237, 1e-24
      %v254 = vmax.f32 %v238, 1e-24
      %v255 = vmax.f32 %v239, 1e-24
      %v256 = vmax.f32 %v240, 1e-24
      %v257 = vmax.f32 %v241, 1e-24
      %v258 = vmax.f32 %v242, 1e-24
      %v259 = vmax.f32 %v243, 1e-24
      %v260 = vmax.f32 %v244, 1e-24
      %v261 = vmax.f32 %v245, 1e-24
      %v262 = vmax.f32 %v246, 1e-24
      %v263 = vmax.f32 %v247, 1e-24
      %v264 = vmax.f32 %v248, 1e-24
      %v265 = vmax.f32 %v249, 1e-24
      %v266 = vrsqrt.pop %v250
      %v267 = vrsqrt.pop %v251
      %v268 = vrsqrt.pop %v252
      %v269 = vrsqrt.pop %v253
      %v270 = vrsqrt.pop %v254
      %v271 = vrsqrt.pop %v255
      %v272 = vrsqrt.pop %v256
      %v273 = vrsqrt.pop %v257
      %v274 = vrsqrt.pop %v258
      %v275 = vrsqrt.pop %v259
      %v276 = vrsqrt.pop %v260
      %v277 = vrsqrt.pop %v261
      %v278 = vrsqrt.pop %v262
      %v279 = vrsqrt.pop %v263
      %v280 = vrsqrt.pop %v264
      %v281 = vrsqrt.pop %v265
      %v282 = vld [vmem:[#allocation2] sm:$0xff]
      %284 = vset.pattern.permute.xlu0 0
      %285 = vperm.xlu0 %284, %v233
      %v286 = vpop.permute.xlu0 %285
      %v288 = vmul.f32 %v282, %v286
      %289 = vxpose.xlu0.b32.start [1/16] %v266, 128
      %290 = vxpose.xlu0.b32.cont [2/16] %v267, 128
      %291 = vxpose.xlu0.b32.cont [3/16] %v268, 128
      %292 = vxpose.xlu0.b32.cont [4/16] %v269, 128
      %293 = vxpose.xlu0.b32.cont [5/16] %v270, 128
      %294 = vxpose.xlu0.b32.cont [6/16] %v271, 128
      %295 = vxpose.xlu0.b32.cont [7/16] %v272, 128
      %296 = vxpose.xlu0.b32.cont [8/16] %v273, 128
      %297 = vxpose.xlu0.b32.cont [9/16] %v274, 128
      %298 = vxpose.xlu0.b32.cont [10/16] %v275, 128
      %299 = vxpose.xlu0.b32.cont [11/16] %v276, 128
      %300 = vxpose.xlu0.b32.cont [12/16] %v277, 128
      %301 = vxpose.xlu0.b32.cont [13/16] %v278, 128
      %302 = vxpose.xlu0.b32.cont [14/16] %v279, 128
      %303 = vxpose.xlu0.b32.cont [15/16] %v280, 128
      %304 = vxpose.xlu0.b32.end [16/16] %v281, 128
      %v305 = vpop.trf.xlu0
      %v306 = vpop.trf.xlu0
      %v307 = vpop.trf.xlu0
      %v308 = vpop.trf.xlu0
      %v309 = vpop.trf.xlu0
      %v310 = vpop.trf.xlu0
      %v311 = vpop.trf.xlu0
      %v312 = vpop.trf.xlu0
      %v313 = vpop.trf.xlu0
      %v314 = vpop.trf.xlu0
      %v315 = vpop.trf.xlu0
      %v316 = vpop.trf.xlu0
      %v317 = vpop.trf.xlu0
      %v318 = vpop.trf.xlu0
      %v319 = vpop.trf.xlu0
      %v320 = vpop.trf.xlu0
      %v321 = vlaneseq
      %v322 = vshrl.u32 %v321, 7
      %v323 = vsub.s32 0, %v322
      %v324 = vrot.slane %v305, %v323
      %v325 = vmul.f32 %v288, %v324
      %326 = vst [vmem:[#allocation5] sm:$0xff] %v325
    $region17: #{cosine_similarity_classifier.1} parent=1 // pred_fallthru
      _
    // Predicated region
    $region18: #{cosine_similarity_classifier.1} parent=1 // pred_check
      _
    $region19: #{cosine_similarity_classifier.1} parent=1 // pred_check_branch
      %328 = sbr.rel (0) target = $region21
    $region20: #{cosine_similarity_classifier.1} parent=1 // pred_region
      %s330 = ssub.s32 128, 128
      %331 = vsyncadd [#allocation6], %s330
      %s333 = sshll.u32 [#allocation5], 4
      %s334 = int_to_ptr.vmem [resolvable:$true] %s333
      %336 = dma.vmem_to_hbm [thread:$0]  %s334, 128, %s2, [#allocation6]
    $region21: #{cosine_similarity_classifier.1} parent=1 // pred_fallthru
      _
    // Predicated region
    $region22: #{cosine_similarity_classifier.1} parent=1 // pred_check
      _
    $region23: #{cosine_similarity_classifier.1} parent=1 // pred_check_branch
      %338 = sbr.rel (0) target = $region25
    $region24: #{cosine_similarity_classifier.1} parent=1 // pred_region
      %339 = dma.done [#allocation6], 128
    $region25: #{cosine_similarity_classifier.1} parent=1 // pred_fallthru
      _
    %340 = vsyncpa [#allocation6], 1

</llo_original>
